<compile_context>
chip_gen: v7x
topology: tpu7x:2x2x1
jax: 0.10.0
libtpu: 0.0.40
codegen_flags: <defaults>
</compile_context>

<pallas_src>
import jax
import jax.numpy as jnp
from jax.experimental import pallas as pl
from jax.experimental.pallas import tpu as pltpu

WEIGHT_DTYPE = jnp.bfloat16
ACT_DTYPE = jnp.bfloat16


def _vmem_capacity_bytes():
    """Physical VMEM of the current chip generation (conservative fallback = v7x)."""
    try:
        info = pltpu.get_tpu_info()
        cap = getattr(info, "vmem_capacity_bytes", None)
        if cap:
            return int(cap)
    except Exception:
        pass
    return 64 * 1024 * 1024


def resblock_kernel(x_ref, rw_ref, rb_ref, act_ref):
    # x_ref  : (TN, H)       bf16 activations for this N tile
    # rw_ref : (1, L, H, H)  ResBlock weights for this head, (in, out) order, bf16
    # rb_ref : (1, L, 1, H)  ResBlock biases for this head, f32
    # act_ref: (1, TN, H)    post-ResBlock activation output, bf16
    h = x_ref[...].astype(jnp.float32)
    num_layers = rw_ref.shape[1]
    for l in range(num_layers):                    # static unroll; L is small (default 1)
        w = rw_ref[0, l]                           # (H, H)  bf16
        b = rb_ref[0, l]                           # (1, H)  f32
        z = jnp.dot(h.astype(w.dtype), w, preferred_element_type=jnp.float32) + b
        h = h + z * jax.nn.sigmoid(z)              # residual + SiLU
    act_ref[0] = h.astype(act_ref.dtype)


def projection_kernel(act_ref, ow_ref, out_ref):
    # act_ref: (1, TN, H)   bf16 post-ResBlock activations
    # ow_ref : (1, H, TV)   vocab-projection weight tile, (in, out) order, bf16
    # out_ref: (1, TN, TV)  logits tile (lane-dense, unmasked stores)
    out_ref[0] = jnp.dot(act_ref[0], ow_ref[0],
                         preferred_element_type=jnp.float32).astype(out_ref.dtype)


def medusa_forward(hidden_states, res_w, res_b, out_w, *,
                   tn=256, tv=2048,
                   weight_dtype=WEIGHT_DTYPE, out_dtype=jnp.bfloat16):
    """hidden_states: (B, S, H)
       res_w: (num_heads, L, H, H)   (in, out) order == W_res.T
       res_b: (num_heads, L, 1, H)
       out_w: (num_heads, H, V)      (in, out) order == W_out.T
       returns (num_heads, B, S, V) in out_dtype (default bf16)."""
    B, S, H = hidden_states.shape
    num_heads, L = res_w.shape[0], res_w.shape[1]
    V = out_w.shape[-1]
    N = B * S

    tn = min(tn, N)
    tv = min(tv, V)
    assert N % tn == 0 and (tn % 8 == 0 or tn == N), (N, tn)
    assert V % tv == 0 and (tv % 128 == 0 or tv == V), (V, tv)

    # Host-side casts: bf16 activations + weights (halves HBM traffic / VMEM),
    # matmuls accumulate in f32 on the MXU; biases stay f32.
    x = hidden_states.reshape(N, H).astype(ACT_DTYPE)
    rw = res_w.astype(weight_dtype)
    ow = out_w.astype(weight_dtype)
    rb = res_b.astype(jnp.float32)

    vmem_cap = _vmem_capacity_bytes()
    budget = int(0.9 * vmem_cap)

    pad8 = lambda n: -(-n // 8) * 8
    pad128 = lambda n: -(-n // 128) * 128

    # ---------------- Phase 1: per-head ResBlock stack ----------------
    # TODO(synk): for H >= 4096 on v7x, single-buffer rw (pipeline_mode=pl.Buffered(1))
    # or K-tile the (H, H) matmul so the 32 MiB/layer weight fits 64 MiB VMEM.
    p1_blocks = (pad8(tn) * pad128(H) * 2            # x tile (bf16)
                 + L * pad8(H) * pad128(H) * 2       # rw block (bf16)
                 + L * pad8(1) * pad128(H) * 4       # rb block (f32)
                 + pad8(tn) * pad128(H) * 2)         # act output tile (bf16)
    p1_vmem = int(min(max(2 * p1_blocks + (2 << 20), 16 << 20), budget))

    act = pl.pallas_call(
        resblock_kernel,
        out_shape=jax.ShapeDtypeStruct((num_heads, N, H), ACT_DTYPE),
        grid_spec=pltpu.PrefetchScalarGridSpec(
            num_scalar_prefetch=0,
            grid=(num_heads, N // tn),
            in_specs=[
                pl.BlockSpec((tn, H), lambda h, n: (n, 0)),
                pl.BlockSpec((1, L, H, H), lambda h, n: (h, 0, 0, 0)),
                pl.BlockSpec((1, L, 1, H), lambda h, n: (h, 0, 0, 0)),
            ],
            out_specs=pl.BlockSpec((1, tn, H), lambda h, n: (h, n, 0)),
        ),
        compiler_params=pltpu.CompilerParams(
            dimension_semantics=("parallel", "parallel"),
            vmem_limit_bytes=p1_vmem),
    )(x, rw, rb)

    # ---------------- Phase 2: vocab projection, weight-stationary over N ----------------
    out_bytes = jnp.dtype(out_dtype).itemsize

    def p2_bytes(tv_):
        return 2 * (pad8(tn) * pad128(H) * 2              # act tile (bf16)
                    + pad8(H) * pad128(tv_) * 2           # ow tile (bf16)
                    + pad8(tn) * pad128(tv_) * out_bytes  # out tile
                    ) + (2 << 20)

    # Shrink the V tile until the exact double-buffered footprint fits this chip.
    while p2_bytes(tv) > budget and tv > 256:
        tv //= 2
    assert V % tv == 0, (V, tv)
    p2_vmem = int(min(max(p2_bytes(tv), 16 << 20), budget))

    out = pl.pallas_call(
        projection_kernel,
        out_shape=jax.ShapeDtypeStruct((num_heads, N, V), out_dtype),
        grid_spec=pltpu.PrefetchScalarGridSpec(
            num_scalar_prefetch=0,
            # N innermost -> each (H, tv) out_w tile is streamed from HBM exactly once
            # per head; the much smaller act tiles (tn <= tv) are re-streamed instead.
            grid=(num_heads, V // tv, N // tn),
            in_specs=[
                pl.BlockSpec((1, tn, H), lambda h, v, n: (h, n, 0)),
                pl.BlockSpec((1, H, tv), lambda h, v, n: (h, 0, v)),
            ],
            out_specs=pl.BlockSpec((1, tn, tv), lambda h, v, n: (h, n, v)),
        ),
        compiler_params=pltpu.CompilerParams(
            # No carried state between grid steps -> every axis is megacore-shardable.
            dimension_semantics=("parallel", "parallel", "parallel"),
            vmem_limit_bytes=p2_vmem),
    )(act, ow)
    return out.reshape(num_heads, B, S, V)


def medusa_reference(hidden_states, res_w, res_b, out_w,
                     weight_dtype=WEIGHT_DTYPE, out_dtype=jnp.bfloat16):
    """Pure-JAX reference mirroring the kernel's bf16-weight / f32-accumulate numerics."""
    x = hidden_states.astype(ACT_DTYPE)
    rw = res_w.astype(weight_dtype)
    ow = out_w.astype(weight_dtype)
    rb = res_b.astype(jnp.float32)
    outs = []
    for h in range(rw.shape[0]):
        y = x.astype(jnp.float32)
        for l in range(rw.shape[1]):
            z = jnp.einsum("bsh,hk->bsk", y.astype(weight_dtype), rw[h, l],
                           preferred_element_type=jnp.float32) + rb[h, l, 0]
            y = y + z * jax.nn.sigmoid(z)
        y = y.astype(ACT_DTYPE)   # kernel stores post-ResBlock activations in bf16
        logits = jnp.einsum("bsh,hv->bsv", y, ow[h],
                            preferred_element_type=jnp.float32)
        outs.append(logits.astype(out_dtype))
    return jnp.stack(outs, axis=0)


if __name__ == "__main__":
    # Small, Pallas-friendly shapes consistent with the module's forward:
    B, S, H, V = 2, 8, 128, 256
    NUM_HEADS, NUM_LAYERS = 5, 1   # MedusaConfig defaults

    key = jax.random.PRNGKey(0)
    k_x, k_rw, k_rb, k_ow = jax.random.split(key, 4)

    hidden_states = jax.random.normal(k_x, (B, S, H), jnp.float32)
    # NOTE: the PyTorch module zero-inits ResBlock weights (and shares one ResBlock
    # instance across the L layers of a head); here we use small deterministic random
    # values so the kernel's matmuls are actually exercised.
    res_w = 0.02 * jax.random.normal(k_rw, (NUM_HEADS, NUM_LAYERS, H, H), jnp.float32)
    res_b = 0.02 * jax.random.normal(k_rb, (NUM_HEADS, NUM_LAYERS, 1, H), jnp.float32)
    out_w = 0.02 * jax.random.normal(k_ow, (NUM_HEADS, H, V), jnp.float32)

    logits = medusa_forward(hidden_states, res_w, res_b, out_w)
    logits = jax.block_until_ready(logits)
    assert logits.shape == (NUM_HEADS, B, S, V)

    ref = medusa_reference(hidden_states, res_w, res_b, out_w)
    max_err = float(jnp.max(jnp.abs(logits.astype(jnp.float32) - ref.astype(jnp.float32))))
    assert max_err < 2e-2, f"mismatch vs reference, max_err={max_err}"

    # TODO(synk): medusa_generate / tree decoding (tokenizer, KV cache, candidate
    # sampling, posterior acceptance) is host-side control flow with no Pallas
    # equivalent; only the medusa_head hot path is implemented as kernels.
    print("KERNEL_OK")
</pallas_src>

<mosaic_0001>
module attributes {stable_mosaic.version = 11 : i64} {
  func.func @resblock_kernel(%arg0: i32, %arg1: i32, %arg2: memref<16x128xbf16, #tpu.memory_space<vmem>>, %arg3: memref<1x1x128x128xbf16, #tpu.memory_space<vmem>>, %arg4: memref<1x1x1x128xf32, #tpu.memory_space<vmem>>, %arg5: memref<1x16x128xbf16, #tpu.memory_space<vmem>>) attributes {dimension_semantics = [#tpu.dimension_semantics<parallel>, #tpu.dimension_semantics<parallel>], iteration_bounds = array<i64: 5, 1>, scalar_prefetch = 0 : i64, scratch_operands = 0 : i64, tpu.core_type = #tpu.core_type<tc>, window_params = [{transform_indices = @transform_0, window_bounds = array<i64: 16, 128>}, {transform_indices = @transform_1, window_bounds = array<i64: 1, 1, 128, 128>}, {transform_indices = @transform_2, window_bounds = array<i64: 1, 1, 1, 128>}, {transform_indices = @transform_3, window_bounds = array<i64: 1, 16, 128>}]} {
    %c0 = arith.constant 0 : index
    %c0_0 = arith.constant 0 : index
    %0 = vector.load %arg2[%c0, %c0_0] : memref<16x128xbf16, #tpu.memory_space<vmem>>, vector<16x128xbf16>
    %1 = arith.extf %0 : vector<16x128xbf16> to vector<16x128xf32>
    %c0_1 = arith.constant 0 : index
    %c0_2 = arith.constant 0 : index
    %c0_3 = arith.constant 0 : index
    %c0_4 = arith.constant 0 : index
    %2 = vector.load %arg3[%c0_1, %c0_2, %c0_3, %c0_4] : memref<1x1x128x128xbf16, #tpu.memory_space<vmem>>, vector<1x1x128x128xbf16>
    %3 = vector.shape_cast %2 : vector<1x1x128x128xbf16> to vector<128x128xbf16>
    %c0_5 = arith.constant 0 : index
    %c0_6 = arith.constant 0 : index
    %c0_7 = arith.constant 0 : index
    %c0_8 = arith.constant 0 : index
    %4 = vector.load %arg4[%c0_5, %c0_6, %c0_7, %c0_8] : memref<1x1x1x128xf32, #tpu.memory_space<vmem>>, vector<1x1x1x128xf32>
    %5 = vector.shape_cast %4 : vector<1x1x1x128xf32> to vector<1x128xf32>
    %6 = arith.truncf %1 : vector<16x128xf32> to vector<16x128xbf16>
    %cst = arith.constant dense<0.000000e+00> : vector<16x128xf32>
    %7 = tpu.matmul %6, %3, %cst {dimension_numbers = #tpu.dot_dimension_numbers<[1], [0], [0], [1], [0, 0, 1, 1], [], []>} : vector<16x128xbf16>, vector<128x128xbf16>, vector<16x128xf32> -> vector<16x128xf32>
    %8 = vector.broadcast %5 : vector<1x128xf32> to vector<16x128xf32>
    %9 = arith.addf %7, %8 : vector<16x128xf32>
    %10 = arith.negf %9 : vector<16x128xf32>
    %11 = math.exp %10 : vector<16x128xf32>
    %cst_9 = arith.constant 1.000000e+00 : f32
    %12 = vector.broadcast %cst_9 : f32 to vector<16x128xf32>
    %13 = arith.addf %12, %11 : vector<16x128xf32>
    %14 = arith.divf %12, %13 : vector<16x128xf32>
    %15 = arith.mulf %9, %14 : vector<16x128xf32>
    %16 = arith.addf %1, %15 : vector<16x128xf32>
    %17 = arith.truncf %16 : vector<16x128xf32> to vector<16x128xbf16>
    %c0_10 = arith.constant 0 : index
    %c0_11 = arith.constant 0 : index
    %c0_12 = arith.constant 0 : index
    %18 = vector.load %arg5[%c0_10, %c0_11, %c0_12] : memref<1x16x128xbf16, #tpu.memory_space<vmem>>, vector<1x16x128xbf16>
    %19 = vector.shape_cast %18 : vector<1x16x128xbf16> to vector<16x128xbf16>
    %20 = vector.shape_cast %17 : vector<16x128xbf16> to vector<1x16x128xbf16>
    tpu.vector_store %arg5[%c0_10, %c0_11, %c0_12], %20 {strides = array<i32>} : memref<1x16x128xbf16, #tpu.memory_space<vmem>>, vector<1x16x128xbf16>,
    return
  }
  func.func @transform_0(%arg0: i32, %arg1: i32) -> (i32, i32) {
    %c0_i32 = arith.constant 0 : i32
    %c0_i32_0 = arith.constant 0 : i32
    return %arg1, %c0_i32 : i32, i32
  }
  func.func @transform_1(%arg0: i32, %arg1: i32) -> (i32, i32, i32, i32) {
    %c0_i32 = arith.constant 0 : i32
    %c0_i32_0 = arith.constant 0 : i32
    %c0_i32_1 = arith.constant 0 : i32
    %c0_i32_2 = arith.constant 0 : i32
    return %arg0, %c0_i32, %c0_i32_0, %c0_i32_1 : i32, i32, i32, i32
  }
  func.func @transform_2(%arg0: i32, %arg1: i32) -> (i32, i32, i32, i32) {
    %c0_i32 = arith.constant 0 : i32
    %c0_i32_0 = arith.constant 0 : i32
    %c0_i32_1 = arith.constant 0 : i32
    %c0_i32_2 = arith.constant 0 : i32
    return %arg0, %c0_i32, %c0_i32_0, %c0_i32_1 : i32, i32, i32, i32
  }
  func.func @transform_3(%arg0: i32, %arg1: i32) -> (i32, i32, i32) {
    %c0_i32 = arith.constant 0 : i32
    %c0_i32_0 = arith.constant 0 : i32
    return %arg0, %arg1, %c0_i32 : i32, i32, i32
  }
}

</mosaic_0001>

<llo_original>
// kernel: tpu_custom_call.1
$region0: #{tpu_custom_call.1}
  #allocation0 [shape = 'u32[]', space=smem, size = 0x4, offset = 0x4, fixed_abs, tag = 'smem constant byte address 0x4 - core index']
  #allocation1 [shape = 'u32[144,128]{1,0:T(1,128)}', space=vmem, size = 0x12000, scoped, tag = 'internal scratch']
  %s0 = inlined_call_operand.hbm [shape: bf16[16,128], index: 0, kind: input, shape index: {}]
  %s1 = inlined_call_operand.hbm [shape: bf16[5,1,128,128], index: 1, kind: input, shape index: {}]
  %s2 = inlined_call_operand.vmem [shape: f32[5,1,1,128], index: 2, kind: input, shape index: {}]
  %s3 = inlined_call_operand.hbm [shape: bf16[5,16,128], index: 3, kind: output, shape index: {}]
  %s4 = sld [smem:[#allocation0]]
  $region53: #{tpu_custom_call.1} parent=0
    _
  %s6 = ssub.s32 1, %s4
  %s7 = scalar_select 0, %s6, %s4
  $region1: #{tpu_custom_call.1} parent=0
    #allocation2 [shape = 'u8[4096]{0}', space=vmem, size = 0x1000, scoped, tag = 'input window, operand 0, single buffered']
    #allocation3 [shape = 's32[2]{0}', space=sflag, size = 0x8, scoped, tag = 'scoped memory for tpu_custom_call.1']
    #allocation4 [shape = 's32[2]{0}', space=sflag, size = 0x8, scoped, tag = 'scoped memory for tpu_custom_call.1']
    #allocation5 [shape = 'u8[65536]{0}', space=vmem, size = 0x10000, scoped, tag = 'input window, operand 1']
    #allocation6 [shape = 's32[2]{0}', space=sflag, size = 0x8, scoped, tag = 'scoped memory for tpu_custom_call.1']
    #allocation7 [shape = 'u8[8192]{0}', space=vmem, size = 0x2000, scoped, tag = 'output window, operand 0']
    %8 = vsyncpa [#allocation3], 0
    %9 = vsyncpa [#allocation6], 0
    %s10 = scalar_lea.sflag [#allocation6], 1
    %11 = vsyncpa %s10, 0
    %12 = vsyncpa [#allocation4], 0
    %s13 = scalar_lea.sflag [#allocation4], 1
    %14 = vsyncpa %s13, 0
    loop: start=0, step=1, limit=7
    $region2: #{tpu_custom_call.1} parent=1 // loop_pre_header
      _
    $region3: #{tpu_custom_call.1} parent=1 // loop_header
      %s16 = sphi 0, %s20
      %p17 = scmp.ge.s32.totalorder %s16, 7
      %s23 = sphi 0, %s35
      %s24 = sphi 0, %s31
      %s25 = sphi 0, %s23
      %s26 = sphi 0, %s24
      %s27 = sphi 0, %s25
      %s28 = sphi 0, %s26
      %s38 = sphi 0, %s40
      %s41 = sphi 0, %s38
      %s42 = sphi 0, %s41
      %s58 = sphi 0, %s42
      %s64 = sphi 0, %s66
      %s67 = sphi 0, %s64
      %s68 = sphi 0, %s67
      %s84 = sphi 0, %s68
      %s90 = sphi 0, %s92
      %s93 = sphi 0, %s90
      %s94 = sphi 0, %s93
      %s110 = sphi 0, %s94
      %s118 = sphi 0, %s120
      %s121 = sphi 0, %s118
      %s122 = sphi 0, %s121
      %s138 = sphi 0, %s122
    $region4: #{tpu_custom_call.1} parent=1 // loop_header_branch
      %19 = sbr.rel (%p17) target = $region8
    $region5: #{tpu_custom_call.1} parent=1 // loop_body
      %s21 = ssub.s32 %s16, 1
      %s22 = ssub.s32 %s16, 2
      %s29 = sadd.s32 1, %s24
      %p30 = scmp.ge.s32.totalorder %s29, 1
      %s31 = scalar_select %p30, 0, %s29
      %s32 = sadd.s32 1, %s23
      %s33 = scalar_select %p30, %s32, %s23
      %p34 = scmp.ge.s32.totalorder %s33, 5
      %s35 = scalar_select %p34, 0, %s33
      %s36 = ssub.s32 %s24, %s31
      %p37 = scmp.eq.s32.totalorder %s36, 0
      %s39 = sadd.s32 %s38, 1
      %s40 = scalar_select %p37, %s38, %s39
      %p43 = pneg %p37
      %p44 = scmp.eq.s32.totalorder %s16, 4
      %p45 = por %p43, %p44
      %p46 = scmp.ne.s32.totalorder %s38, %s41
      %p47 = scmp.eq.s32.totalorder %s16, 0
      %p48 = por %p46, %p47
      %p49 = scmp.ne.s32.totalorder %s38, %s41
      %p50 = scmp.eq.s32.totalorder %s21, 4
      %p51 = por %p49, %p50
      %p52 = scmp.ne.s32.totalorder %s41, %s42
      %p53 = scmp.eq.s32.totalorder %s21, 0
      %p54 = por %p52, %p53
      %p55 = scmp.ne.s32.totalorder %s41, %s42
      %p56 = scmp.eq.s32.totalorder %s22, 4
      %p57 = por %p55, %p56
      %p59 = scmp.ne.s32.totalorder %s42, %s58
      %p60 = scmp.eq.s32.totalorder %s22, 0
      %p61 = por %p59, %p60
      %s62 = ssub.s32 %s23, %s35
      %p63 = scmp.eq.s32.totalorder %s62, 0
      %s65 = sadd.s32 %s64, 1
      %s66 = scalar_select %p63, %s64, %s65
      %p69 = pneg %p63
      %p70 = scmp.eq.s32.totalorder %s16, 4
      %p71 = por %p69, %p70
      %p72 = scmp.ne.s32.totalorder %s64, %s67
      %p73 = scmp.eq.s32.totalorder %s16, 0
      %p74 = por %p72, %p73
      %p75 = scmp.ne.s32.totalorder %s64, %s67
      %p76 = scmp.eq.s32.totalorder %s21, 4
      %p77 = por %p75, %p76
      %p78 = scmp.ne.s32.totalorder %s67, %s68
      %p79 = scmp.eq.s32.totalorder %s21, 0
      %p80 = por %p78, %p79
      %p81 = scmp.ne.s32.totalorder %s67, %s68
      %p82 = scmp.eq.s32.totalorder %s22, 4
      %p83 = por %p81, %p82
      %p85 = scmp.ne.s32.totalorder %s68, %s84
      %p86 = scmp.eq.s32.totalorder %s22, 0
      %p87 = por %p85, %p86
      %s88 = ssub.s32 %s23, %s35
      %p89 = scmp.eq.s32.totalorder %s88, 0
      %s91 = sadd.s32 %s90, 1
      %s92 = scalar_select %p89, %s90, %s91
      %p95 = pneg %p89
      %p96 = scmp.eq.s32.totalorder %s16, 4
      %p97 = por %p95, %p96
      %p98 = scmp.ne.s32.totalorder %s90, %s93
      %p99 = scmp.eq.s32.totalorder %s16, 0
      %p100 = por %p98, %p99
      %p101 = scmp.ne.s32.totalorder %s90, %s93
      %p102 = scmp.eq.s32.totalorder %s21, 4
      %p103 = por %p101, %p102
      %p104 = scmp.ne.s32.totalorder %s93, %s94
      %p105 = scmp.eq.s32.totalorder %s21, 0
      %p106 = por %p104, %p105
      %p107 = scmp.ne.s32.totalorder %s93, %s94
      %p108 = scmp.eq.s32.totalorder %s22, 4
      %p109 = por %p107, %p108
      %p111 = scmp.ne.s32.totalorder %s94, %s110
      %p112 = scmp.eq.s32.totalorder %s22, 0
      %p113 = por %p111, %p112
      %s114 = ssub.s32 %s23, %s35
      %s115 = ssub.s32 %s24, %s31
      %s116 = sor.u32 %s114, %s115
      %p117 = scmp.eq.s32.totalorder %s116, 0
      %s119 = sadd.s32 %s118, 1
      %s120 = scalar_select %p117, %s118, %s119
      %p123 = pneg %p117
      %p124 = scmp.eq.s32.totalorder %s16, 4
      %p125 = por %p123, %p124
      %p126 = scmp.ne.s32.totalorder %s118, %s121
      %p127 = scmp.eq.s32.totalorder %s16, 0
      %p128 = por %p126, %p127
      %p129 = scmp.ne.s32.totalorder %s118, %s121
      %p130 = scmp.eq.s32.totalorder %s21, 4
      %p131 = por %p129, %p130
      %p132 = scmp.ne.s32.totalorder %s121, %s122
      %p133 = scmp.eq.s32.totalorder %s21, 0
      %p134 = por %p132, %p133
      %p135 = scmp.ne.s32.totalorder %s121, %s122
      %p136 = scmp.eq.s32.totalorder %s22, 4
      %p137 = por %p135, %p136
      %p139 = scmp.ne.s32.totalorder %s122, %s138
      %p140 = scmp.eq.s32.totalorder %s22, 0
      %p141 = por %p139, %p140
      %p142 = scmp.le.s32.totalorder 1, %s16
      %p143 = scmp.lt.s32.totalorder %s16, 6
      %p144 = pnand %p142, %p143
      %p145 = pneg %p144
      // Predicated region
      $region9: #{tpu_custom_call.1} parent=5 // pred_check
        _
      $region10: #{tpu_custom_call.1} parent=5 // pred_check_branch
        %147 = sbr.rel (%p144) target = $region12
      $region11: #{tpu_custom_call.1} parent=5 // pred_region
        %s148 = ssub.s32 %s16, 1
        // Predicated region
        $region13: #{tpu_custom_call.1} parent=11 // pred_check
          %p149 = pneg %p54
        $region14: #{tpu_custom_call.1} parent=11 // pred_check_branch
          %151 = sbr.rel (%p149) target = $region16
        $region15: #{tpu_custom_call.1} parent=11 // pred_region
          %s152 = smul.u32 2, %s26
          %s154 = ssub.s32 128, 128
          %155 = vsyncadd [#allocation3], %s154
          %s156 = smul.addr %s152, 64
          %s157 = scalar_lea.hbm %s0, %s156
          %s158 = sshll.u32 [#allocation2], 4
          %s159 = int_to_ptr.vmem [resolvable:$true] %s158
          %164 = dma.hbm_to_vmem [thread:$0]  %s157, 128, %s159, [#allocation3], 64, 64, 4
        $region16: #{tpu_custom_call.1} parent=11 // pred_fallthru
          _
      $region12: #{tpu_custom_call.1} parent=5 // pred_fallthru
        _
      %p165 = scmp.lt.s32.totalorder %s16, 5
      // Predicated region
      $region17: #{tpu_custom_call.1} parent=5 // pred_check
        %p166 = pneg %p165
      $region18: #{tpu_custom_call.1} parent=5 // pred_check_branch
        %168 = sbr.rel (%p166) target = $region20
      $region19: #{tpu_custom_call.1} parent=5 // pred_region
        // Predicated region
        $region21: #{tpu_custom_call.1} parent=19 // pred_check
          %p169 = pneg %p74
        $region22: #{tpu_custom_call.1} parent=19 // pred_check_branch
          %171 = sbr.rel (%p169) target = $region24
        $region23: #{tpu_custom_call.1} parent=19 // pred_region
          %s172 = sand.u32 %s64, 1
          %s173 = scalar_lea.sflag [#allocation6], %s172
          %s174 = sand.u32 %s64, 1
          %s175 = smul.addr %s174, 64
          %s176 = scalar_lea.vmem [#allocation5], %s175
          %s178 = ssub.s32 1024, 1024
          %179 = vsyncadd %s173, %s178
          %s180 = smul.addr %s23, 16
          %s181 = smul.addr %s180, 64
          %s182 = scalar_lea.hbm %s1, %s181
          %s183 = sshll.u32 %s176, 4
          %s184 = int_to_ptr.vmem [resolvable:$true] %s183
          %189 = dma.hbm_to_vmem [thread:$0]  %s182, 1024, %s184, %s173, 64, 64, 4
        $region24: #{tpu_custom_call.1} parent=19 // pred_fallthru
          _
        // Predicated region
        $region25: #{tpu_custom_call.1} parent=19 // pred_check
          %p190 = pneg %p100
        $region26: #{tpu_custom_call.1} parent=19 // pred_check_branch
          %192 = sbr.rel (%p190) target = $region28
        $region27: #{tpu_custom_call.1} parent=19 // pred_region
          %p193 = scmp.lt.s32.totalorder %s23, 4
          %s194 = scalar_select %p193, %s23, 4
          %s195 = scalar_lea.vmem %s2, %s194
        $region28: #{tpu_custom_call.1} parent=19 // pred_fallthru
          _
      $region20: #{tpu_custom_call.1} parent=5 // pred_fallthru
        _
      %p196 = scmp.le.s32.totalorder 1, %s16
      %p197 = scmp.lt.s32.totalorder %s16, 6
      %p198 = pnand %p196, %p197
      %p199 = pneg %p198
      // Predicated region
      $region29: #{tpu_custom_call.1} parent=5 // pred_check
        _
      $region30: #{tpu_custom_call.1} parent=5 // pred_check_branch
        %201 = sbr.rel (%p198) target = $region32
      $region31: #{tpu_custom_call.1} parent=5 // pred_region
        %s202 = ssub.s32 %s16, 1
        // Predicated region
        $region33: #{tpu_custom_call.1} parent=31 // pred_check
          %p203 = pneg %p54
        $region34: #{tpu_custom_call.1} parent=31 // pred_check_branch
          %205 = sbr.rel (%p203) target = $region36
        $region35: #{tpu_custom_call.1} parent=31 // pred_region
          %206 = dma.done [#allocation3], 128
        $region36: #{tpu_custom_call.1} parent=31 // pred_fallthru
          _
        %s207 = sand.u32 %s67, 1
        %s208 = scalar_lea.sflag [#allocation6], %s207
        %s209 = sand.u32 %s67, 1
        %s210 = smul.addr %s209, 64
        %s211 = scalar_lea.vmem [#allocation5], %s210
        // Predicated region
        $region37: #{tpu_custom_call.1} parent=31 // pred_check
          %p212 = pneg %p80
        $region38: #{tpu_custom_call.1} parent=31 // pred_check_branch
          %214 = sbr.rel (%p212) target = $region40
        $region39: #{tpu_custom_call.1} parent=31 // pred_region
          %215 = dma.done %s208, 1024
        $region40: #{tpu_custom_call.1} parent=31 // pred_fallthru
          _
        %p216 = pneg %p54
        %p217 = pneg %p51
        %s218 = sand.u32 %s67, 1
        %s219 = scalar_lea.sflag [#allocation6], %s218
        %s220 = sand.u32 %s67, 1
        %s221 = smul.addr %s220, 64
        %s222 = scalar_lea.vmem [#allocation5], %s221
        %p223 = pneg %p80
        %p224 = pneg %p77
        %p225 = scmp.lt.s32.totalorder %s25, 4
        %s226 = scalar_select %p225, %s25, 4
        %s227 = scalar_lea.vmem %s2, %s226
        %p228 = pneg %p106
        %p229 = pneg %p103
        %p230 = pneg %p134
        %p231 = pneg %p131
        %s232 = sand.u32 %s121, 1
        %s233 = scalar_lea.sflag [#allocation4], %s232
        %s234 = sand.u32 %s121, 1
        %s235 = smul.addr %s234, 8
        %s236 = scalar_lea.vmem [#allocation7], %s235
        %s237 = smul.u32 2, %s26
        %p238 = scmp.lt.s32.totalorder %s25, 4
        %s239 = scalar_select %p238, %s25, 4
        %s240 = scalar_lea.vmem %s2, %s239
        %s241 = smul.u32 2, %s26
        %v243 = vld [vmem:[#allocation2] sm:$0xf]
        %v244 = vld [vmem:[#allocation2 + $0x4] sm:$0xf]
        %v245 = vunpack.c.l.bf16 %v243
        %v246 = vunpack.c.l.bf16 %v244
        %v247 = vld [vmem:[%s211] sm:$0xf]
        %v248 = vld [vmem:[%s211 + $0x4] sm:$0xf]
        %v249 = vld [vmem:[%s211 + $0x8] sm:$0xf]
        %v250 = vld [vmem:[%s211 + $0xc] sm:$0xf]
        %v251 = vld [vmem:[%s211 + $0x10] sm:$0xf]
        %v252 = vld [vmem:[%s211 + $0x14] sm:$0xf]
        %v253 = vld [vmem:[%s211 + $0x18] sm:$0xf]
        %v254 = vld [vmem:[%s211 + $0x1c] sm:$0xf]
        %v255 = vld [vmem:[%s211 + $0x20] sm:$0xf]
        %v256 = vld [vmem:[%s211 + $0x24] sm:$0xf]
        %v257 = vld [vmem:[%s211 + $0x28] sm:$0xf]
        %v258 = vld [vmem:[%s211 + $0x2c] sm:$0xf]
        %v259 = vld [vmem:[%s211 + $0x30] sm:$0xf]
        %v260 = vld [vmem:[%s211 + $0x34] sm:$0xf]
        %v261 = vld [vmem:[%s211 + $0x38] sm:$0xf]
        %v262 = vld [vmem:[%s211 + $0x3c] sm:$0xf]
        %v263 = vld [vmem:[%s240] sm:$0x1]
        %v265 = vlaneseq
        %v266 = vshrl.u32 %v265, 7
        %v267 = vsub.s32 0, %v266
        %v268 = vrot.slane %v263, %v267
        %v272 = vunpack.c.l.b16 %v243
        %v273 = vunpack.c.l.b16 %v244
        %v274 = vpack.c.b16 %v273, %v272
        %v292 = vunpack.c.l.b16 %v247
        %v293 = vunpack.c.l.b16 %v248
        %v294 = vunpack.c.l.b16 %v249
        %v295 = vunpack.c.l.b16 %v250
        %v296 = vunpack.c.l.b16 %v251
        %v297 = vunpack.c.l.b16 %v252
        %v298 = vunpack.c.l.b16 %v253
        %v299 = vunpack.c.l.b16 %v254
        %v300 = vunpack.c.l.b16 %v255
        %v301 = vunpack.c.l.b16 %v256
        %v302 = vunpack.c.l.b16 %v257
        %v303 = vunpack.c.l.b16 %v258
        %v304 = vunpack.c.l.b16 %v259
        %v305 = vunpack.c.l.b16 %v260
        %v306 = vunpack.c.l.b16 %v261
        %v307 = vunpack.c.l.b16 %v262
        %v308 = vpack.c.b16 %v293, %v292
        %v309 = vpack.c.b16 %v295, %v294
        %v310 = vpack.c.b16 %v297, %v296
        %v311 = vpack.c.b16 %v299, %v298
        %v312 = vpack.c.b16 %v301, %v300
        %v313 = vpack.c.b16 %v303, %v302
        %v314 = vpack.c.b16 %v305, %v304
        %v315 = vpack.c.b16 %v307, %v306
        %324 = vmatprep.subr.bf16.mxu0 0
        %325 = vmatpush1.bf16.msra.mxu0 %v308
        %326 = vmatprep.subr.bf16.mxu0 0
        %327 = vmatpush1.bf16.msra.mxu0 %v309
        %328 = vmatprep.subr.bf16.mxu0 0
        %329 = vmatpush1.bf16.msra.mxu0 %v310
        %330 = vmatprep.subr.bf16.mxu0 0
        %331 = vmatpush1.bf16.msra.mxu0 %v311
        %332 = vmatprep.subr.bf16.mxu0 0
        %333 = vmatpush1.bf16.msra.mxu0 %v312
        %334 = vmatprep.subr.bf16.mxu0 0
        %335 = vmatpush1.bf16.msra.mxu0 %v313
        %336 = vmatprep.subr.bf16.mxu0 0
        %337 = vmatpush1.bf16.msra.mxu0 %v314
        %338 = vmatprep.subr.bf16.mxu0 0
        %339 = vmatpush1.bf16.msra.mxu0 %v315
        %340 = vmatprep.subr.bf16.mxu0 0
        %341 = vmatpush1.bf16.msra.mxu0 0
        %342 = vmatprep.subr.bf16.mxu0 0
        %343 = vmatpush1.bf16.msra.mxu0 0
        %344 = vmatprep.subr.bf16.mxu0 0
        %345 = vmatpush1.bf16.msra.mxu0 0
        %346 = vmatprep.subr.bf16.mxu0 0
        %347 = vmatpush1.bf16.msra.mxu0 0
        %348 = vmatprep.subr.bf16.mxu0 0
        %349 = vmatpush1.bf16.msra.mxu0 0
        %350 = vmatprep.subr.bf16.mxu0 0
        %351 = vmatpush1.bf16.msra.mxu0 0
        %352 = vmatprep.subr.bf16.mxu0 0
        %353 = vmatpush1.bf16.msra.mxu0 0
        %354 = vmatprep.subr.bf16.mxu0 0
        %355 = vmatpush1.bf16.msra.mxu0 0
        %356 = vmatprep.mubr.bf16.mxu0 0
        %357 = vmatmul.mubr.bf16.gmra.mrb[0].mxu0 %v274
        %v358 = vpop.f32.mrb[0].mxu0
        %v359 = vadd.f32 %v268, %v358
        %v360 = vpop.f32.mrb[0].mxu0
        %v361 = vpop.f32.mrb[0].mxu0
        %v362 = vadd.f32 %v268, %v361
        %v363 = vpop.f32.mrb[0].mxu0
        %364 = vdwg.mxu0
        %v365 = vxor.u32 %v359, 2147483648
        %v366 = vxor.u32 %v362, 2147483648
        %v367 = vmul.f32 %v365, 1.442695
        %v368 = vpow.pop %v367
        %v369 = vmul.f32 %v366, 1.442695
        %v370 = vpow.pop %v369
        %v371 = vadd.f32 %v368, 1.0
        %v372 = vadd.f32 %v370, 1.0
        %v373 = vrcp.pop %v371
        %v374 = vmul.f32 1.0, %v373
        %v375 = vrcp.pop %v372
        %v376 = vmul.f32 1.0, %v375
        %v377 = vmul.f32 %v359, %v374
        %v378 = vmul.f32 %v362, %v376
        %v379 = vadd.f32 %v245, %v377
        %v380 = vadd.f32 %v246, %v378
        %v381 = vpack.c.bf16 %v380, %v379
        %v383 = vunpack.c.l.b16 %v381
        %v384 = vunpack.c.h.b16 %v381
        %v385 = vpack.c.b16 %v383, %v383
        %v386 = vpack.c.b16 %v384, %v384
        %389 = vst [vmem:[%s236] sm:$0xf] %v385
        %390 = vst [vmem:[%s236 + $0x4] sm:$0xf] %v386
        %s391 = sand.u32 %s121, 1
        %s392 = scalar_lea.sflag [#allocation4], %s391
        %s393 = sand.u32 %s121, 1
        %s394 = smul.addr %s393, 8
        %s395 = scalar_lea.vmem [#allocation7], %s394
        // Predicated region
        $region41: #{tpu_custom_call.1} parent=31 // pred_check
          %p396 = pneg %p131
        $region42: #{tpu_custom_call.1} parent=31 // pred_check_branch
          %398 = sbr.rel (%p396) target = $region44
        $region43: #{tpu_custom_call.1} parent=31 // pred_region
          %s399 = smul.u32 2, %s26
          %s401 = ssub.s32 128, 128
          %402 = vsyncadd %s392, %s401
          %s403 = smul.addr %s25, 2
          %s404 = sadd.s32 %s399, %s403
          %s405 = smul.addr %s404, 64
          %s406 = scalar_lea.hbm %s3, %s405
          %s407 = sshll.u32 %s395, 4
          %s408 = int_to_ptr.vmem [resolvable:$true] %s407
          %413 = dma.vmem_to_hbm [thread:$0]  %s408, 128, %s406, %s392, 64, 64, 4
        $region44: #{tpu_custom_call.1} parent=31 // pred_fallthru
          _
      $region32: #{tpu_custom_call.1} parent=5 // pred_fallthru
        _
      %p414 = scmp.le.s32.totalorder 2, %s16
      // Predicated region
      $region45: #{tpu_custom_call.1} parent=5 // pred_check
        %p415 = pneg %p414
      $region46: #{tpu_custom_call.1} parent=5 // pred_check_branch
        %417 = sbr.rel (%p415) target = $region48
      $region47: #{tpu_custom_call.1} parent=5 // pred_region
        %s418 = ssub.s32 %s16, 2
        // Predicated region
        $region49: #{tpu_custom_call.1} parent=47 // pred_check
          %p419 = pneg %p137
        $region50: #{tpu_custom_call.1} parent=47 // pred_check_branch
          %421 = sbr.rel (%p419) target = $region52
        $region51: #{tpu_custom_call.1} parent=47 // pred_region
          %s422 = sand.u32 %s122, 1
          %s423 = scalar_lea.sflag [#allocation4], %s422
          %s424 = sand.u32 %s122, 1
          %s425 = smul.addr %s424, 8
          %s426 = scalar_lea.vmem [#allocation7], %s425
          %427 = dma.done %s423, 128
        $region52: #{tpu_custom_call.1} parent=47 // pred_fallthru
          _
      $region48: #{tpu_custom_call.1} parent=5 // pred_fallthru
        _
    $region6: #{tpu_custom_call.1} parent=1 // loop_footer
      %s20 = sadd.s32 1, %s16
    $region7: #{tpu_custom_call.1} parent=1 // loop_footer_branch
      %15 = sbr.rel target = $region3
    $region8: #{tpu_custom_call.1} parent=1 // loop_exit
      _
    %428 = vsyncpa [#allocation3], 1
    %s429 = scalar_lea.sflag [#allocation3], 1
    %430 = vsyncpa %s429, 1
    %431 = vsyncpa [#allocation6], 1
    %s432 = scalar_lea.sflag [#allocation6], 1
    %433 = vsyncpa %s432, 1
    %434 = vsyncpa [#allocation4], 1
    %s435 = scalar_lea.sflag [#allocation4], 1
    %436 = vsyncpa %s435, 1

</llo_original>
